<compile_context>
chip_gen: v7x
topology: tpu7x:2x2x1
jax: 0.10.0
libtpu: 0.0.40
codegen_flags: <defaults>
</compile_context>

<pallas_src>
import numpy as np
import jax
import jax.numpy as jnp
from jax.experimental import pallas as pl
from jax.experimental.pallas import tpu as pltpu


# ----------------------------------------------------------------------------
# Generic tiled matmul + additive kernel:   out = A @ B + add
#   A: (M, K) bf16/f32    B: (K, N) bf16/f32
#   add: (M, N) per-row additive  OR  (1, N) broadcast bias (kept in f32)
# grid = (M/tm, N/tn, K/tk); reduction axis last ("arbitrary"); f32 VMEM
# accumulator scratch; pl.when init on the first K step / store on the last.
# Used for: RGCN aggregation, GCN lin + aggregation, and the rec-score matmul
# (ge passed pre-transposed so the output is lane-dense over n_entity).
# ----------------------------------------------------------------------------
def _matmul_add_kernel(a_ref, b_ref, add_ref, o_ref, acc_ref):
    kk = pl.program_id(2)

    @pl.when(kk == 0)
    def _():
        acc_ref[...] = jnp.broadcast_to(add_ref[...].astype(jnp.float32),
                                        acc_ref.shape)

    acc_ref[...] += jnp.dot(a_ref[...], b_ref[...],
                            preferred_element_type=jnp.float32)

    @pl.when(kk == pl.num_programs(2) - 1)
    def _():
        o_ref[...] = acc_ref[...].astype(o_ref.dtype)


def _pick_tile(full, desired, quantum):
    """Largest tile <= desired that divides `full` and is a multiple of
    `quantum` (TPU (8,128) block constraint); fall back to the full dim."""
    t = (desired // quantum) * quantum
    while t >= quantum:
        if full % t == 0:
            return t
        t -= quantum
    return full


def matmul_add(a, b, add, *, tm=256, tn=1024, tk=512, out_dtype=jnp.float32):
    m, k = a.shape
    k2, n = b.shape
    assert k == k2 and add.shape[1] == n and add.shape[0] in (1, m)
    tm = _pick_tile(m, tm, 8)        # second-minor tiles: multiples of 8
    tn = _pick_tile(n, tn, 128)      # minor (lane) tiles: multiples of 128
    tk = _pick_tile(k, tk, 128)

    if add.shape[0] == 1:            # column bias, broadcast over rows
        add_spec = pl.BlockSpec((1, tn), lambda i, j, kk: (0, j))
    else:                            # per-row additive (e.g. RGCN root + bias)
        add_spec = pl.BlockSpec((tm, tn), lambda i, j, kk: (i, j))

    return pl.pallas_call(
        _matmul_add_kernel,
        out_shape=jax.ShapeDtypeStruct((m, n), out_dtype),
        grid=(m // tm, n // tn, k // tk),
        in_specs=[
            pl.BlockSpec((tm, tk), lambda i, j, kk: (i, kk)),
            pl.BlockSpec((tk, tn), lambda i, j, kk: (kk, j)),
            add_spec,
        ],
        out_specs=pl.BlockSpec((tm, tn), lambda i, j, kk: (i, j)),
        scratch_shapes=[pltpu.VMEM((tm, tn), jnp.float32)],
        compiler_params=pltpu.CompilerParams(
            dimension_semantics=("parallel", "parallel", "arbitrary"),
            vmem_limit_bytes=32 * 1024 * 1024),
    )(a, b, add)


# ----------------------------------------------------------------------------
# Fused self-attention (entity + word) + GateLayer kernel (tiny, single shot)
# ----------------------------------------------------------------------------
def _self_attention(h, mask, a, b_row):
    """SelfAttentionSeq.forward, vectorized over the batch (no python loop).

    h: (B, L, D) f32, mask: (B, L, 1) f32 (1.0 at padding)
    a: (D, da) f32, b_row: (1, 1, da) f32 (original (da,1) parameter, reshaped)
    returns (B, D)
    """
    bsz = h.shape[0]
    a3 = jnp.broadcast_to(a, (bsz,) + a.shape)                       # (B, D, da)
    s = jnp.tanh(jnp.einsum('bld,bde->ble', h, a3,
                            preferred_element_type=jnp.float32))     # (B, L, da)
    e = jnp.sum(s * b_row, axis=-1, keepdims=True)                   # (B, L, 1)
    full_mask = -1e30 * mask
    # NOTE: if every position of a row is padding, batch_mask==0 disables the
    # mask and attention averages over padding tokens — matches PyTorch.
    batch_mask = (jnp.sum(1.0 - mask, axis=1, keepdims=True) > 0).astype(jnp.float32)
    e = e + full_mask * batch_mask
    e = e - jnp.max(e, axis=1, keepdims=True)
    p = jnp.exp(e)
    attn = p / jnp.sum(p, axis=1, keepdims=True)                     # softmax over L
    return jnp.sum(attn * h, axis=1)                                 # (B, D)


def attn_gate_kernel(ent_rep_ref, ent_mask_ref, word_rep_ref, word_mask_ref,
                     a_e_ref, b_e_ref, a_w_ref, b_w_ref,
                     w1a_ref, w1b_ref, b1_ref, w2_ref, b2_ref,
                     user_ref):
    """entity self-attn + word self-attn + GateLayer -> user_rep (B, D).

    All linear weights are pre-transposed host-side so every dot is a canonical
    (M,K)x(K,N) matmul; the GateLayer Linear over cat([ent, word]) is split
    into two halves to avoid an in-kernel lane concatenation.
    """
    ent_attn = _self_attention(ent_rep_ref[...], ent_mask_ref[...],
                               a_e_ref[...], b_e_ref[...])
    word_attn = _self_attention(word_rep_ref[...], word_mask_ref[...],
                                a_w_ref[...], b_w_ref[...])
    norm = (jnp.dot(ent_attn, w1a_ref[...], preferred_element_type=jnp.float32)
            + jnp.dot(word_attn, w1b_ref[...], preferred_element_type=jnp.float32)
            + b1_ref[...])
    gate = jax.nn.sigmoid(
        jnp.dot(norm, w2_ref[...], preferred_element_type=jnp.float32)
        + b2_ref[...])                                               # (B, 1)
    user_ref[...] = gate * ent_attn + (1.0 - gate) * word_attn


def attn_gate_forward(ent_rep, ent_mask3, word_rep, word_mask3,
                      a_e, b_e_row, a_w, b_w_row,
                      w1a_t, w1b_t, b1, w2_t, b2):
    bsz, _, d = ent_rep.shape
    vmem = pl.BlockSpec(memory_space=pltpu.MemorySpace.VMEM)
    return pl.pallas_call(
        attn_gate_kernel,
        out_shape=jax.ShapeDtypeStruct((bsz, d), jnp.float32),
        in_specs=[vmem] * 13,
        out_specs=vmem,
    )(ent_rep, ent_mask3, word_rep, word_mask3,
      a_e, b_e_row, a_w, b_w_row, w1a_t, w1b_t, b1, w2_t, b2)


# ----------------------------------------------------------------------------
# Graph glue: densify edge lists into normalized adjacency matrices (numpy)
# TODO(synk): block-sparse adjacency streaming via PrefetchScalarGridSpec for
# production KG sizes (dense (R,N,N) is O(R*N^2) mostly on zeros).
# ----------------------------------------------------------------------------
def build_rgcn_adjacency(entity_edges, n_relation, n_entity):
    # edge = (src, dst, rel); messages flow src -> dst; aggr = 'mean' per relation.
    adj = np.zeros((n_relation, n_entity, n_entity), np.float32)
    for (s, t, r) in entity_edges:
        adj[r, t, s] += 1.0
    deg = adj.sum(axis=2, keepdims=True)
    adj = adj / np.maximum(deg, 1.0)
    return adj


def build_gcn_adjacency(word_edges, n_word):
    # word_edges = (src_list, dst_list); add self-loops; symmetric normalization.
    src = list(word_edges[0]) + list(range(n_word))
    dst = list(word_edges[1]) + list(range(n_word))
    deg = np.zeros((n_word,), np.float32)
    for t in dst:
        deg[t] += 1.0
    dinv = np.where(deg > 0, 1.0 / np.sqrt(np.maximum(deg, 1e-12)), 0.0)
    adj = np.zeros((n_word, n_word), np.float32)
    for s, t in zip(src, dst):
        adj[t, s] += dinv[s] * dinv[t]
    return adj


# ----------------------------------------------------------------------------
# KGSF (recommend / forward path) built from the Pallas kernels
# ----------------------------------------------------------------------------
class KGSFPallas:
    def __init__(self, *, n_entity, n_word, n_relation, num_bases, kg_emb_dim,
                 entity_edges, word_edges, pad_entity_idx=0, pad_word_idx=0,
                 movie_ids=None, key=None):
        self.n_entity = n_entity
        self.n_word = n_word
        self.n_relation = n_relation
        self.kg_emb_dim = kg_emb_dim
        self.pad_entity_idx = pad_entity_idx
        self.pad_word_idx = pad_word_idx
        self.movie_ids = jnp.asarray(movie_ids if movie_ids is not None
                                     else list(range(min(8, n_entity))), jnp.int32)

        d = kg_emb_dim
        da = kg_emb_dim
        ks = jax.random.split(key if key is not None else jax.random.PRNGKey(0), 16)

        # word_kg_embedding (padding row zeroed)
        word_emb = jax.random.normal(ks[0], (n_word, d), jnp.float32) * d ** -0.5
        self.word_emb = word_emb.at[pad_word_idx].set(0.0)

        # RGCN entity encoder params (basis decomposition)
        self.rgcn_basis = jax.random.normal(ks[1], (num_bases, n_entity, d), jnp.float32) * 0.1
        self.rgcn_comp = jax.random.normal(ks[2], (n_relation, num_bases), jnp.float32) * 0.5
        self.rgcn_root = jax.random.normal(ks[3], (n_entity, d), jnp.float32) * 0.1
        self.rgcn_bias = jax.random.normal(ks[4], (d,), jnp.float32) * 0.05

        # GCN word encoder params
        self.gcn_w = jax.random.normal(ks[5], (d, d), jnp.float32) * d ** -0.5
        self.gcn_b = jax.random.normal(ks[6], (d,), jnp.float32) * 0.05

        # Self attentions
        self.attn_e_a = jax.random.normal(ks[7], (d, da), jnp.float32) * d ** -0.5
        self.attn_e_b = jax.random.normal(ks[8], (da, 1), jnp.float32) * da ** -0.5
        self.attn_w_a = jax.random.normal(ks[9], (d, da), jnp.float32) * d ** -0.5
        self.attn_w_b = jax.random.normal(ks[10], (da, 1), jnp.float32) * da ** -0.5

        # Gate layer
        self.gate_w1 = jax.random.normal(ks[11], (d, 2 * d), jnp.float32) * (2 * d) ** -0.5
        self.gate_b1 = jax.random.normal(ks[12], (d,), jnp.float32) * 0.05
        self.gate_w2 = jax.random.normal(ks[13], (1, d), jnp.float32) * d ** -0.5
        self.gate_b2 = jax.random.normal(ks[14], (1,), jnp.float32) * 0.05

        # rec_bias (only the bias is used in forward; F.linear weights = ge)
        self.rec_bias = jax.random.normal(ks[15], (n_entity,), jnp.float32) * 0.05

        # dense adjacencies: keep f32 originals (reference) + bf16 kernel views
        adj_rel_np = build_rgcn_adjacency(entity_edges, n_relation, n_entity)
        adj_word_np = build_gcn_adjacency(word_edges, n_word)
        self.adj_rel = jnp.asarray(adj_rel_np)                     # (R, N, N) f32
        self.adj_word = jnp.asarray(adj_word_np)                   # (Nw, Nw) f32
        # relation axis flattened into K: adj_flat[dst, r*N + src] = adj[r, dst, src]
        self.adj_rel_flat = jnp.asarray(
            adj_rel_np.transpose(1, 0, 2).reshape(n_entity, n_relation * n_entity)
        ).astype(jnp.bfloat16)
        self.adj_word_bf16 = self.adj_word.astype(jnp.bfloat16)
        self.word_emb_bf16 = self.word_emb.astype(jnp.bfloat16)

        # kernel-layout (pre-transposed / pre-reshaped) parameter views
        self.gcn_w_t = self.gcn_w.T.astype(jnp.bfloat16)           # (D_in, D_out)
        self.attn_e_b_row = self.attn_e_b.reshape(1, 1, da)
        self.attn_w_b_row = self.attn_w_b.reshape(1, 1, da)
        self.gate_w1a_t = self.gate_w1[:, :d].T                    # (D, D)
        self.gate_w1b_t = self.gate_w1[:, d:].T                    # (D, D)
        self.gate_w2_t = self.gate_w2.T                            # (D, 1)

    # ---- recommend (mode='teacher'): the dense forward path ----
    def recommend(self, batch, mode="teacher"):
        ctx_entities = batch["entity_batch"]       # (B, Le) int32
        ctx_words = batch["word_batch"]            # (B, Lw) int32
        d = self.kg_emb_dim

        # RGCN: hoist the comp x basis expansion to one XLA einsum (static per
        # forward), flatten relations into the contraction axis, then a single
        # tiled bf16 MXU matmul with the (root + bias) additive.
        w_flat = (jnp.einsum("rb,bnd->rnd", self.rgcn_comp, self.rgcn_basis)
                  .reshape(self.n_relation * self.n_entity, d)
                  .astype(jnp.bfloat16))                                   # (R*N, D)
        root_bias = self.rgcn_root + self.rgcn_bias[None, :]               # (N, D) f32
        ge = matmul_add(self.adj_rel_flat, w_flat, root_bias)              # (n_entity, D) f32

        # GCN: lin (x @ W^T, W pre-transposed) then A_hat @ xw + bias,
        # both through the tiled matmul kernel (xw streamed onward as bf16).
        xw = matmul_add(self.word_emb_bf16, self.gcn_w_t,
                        jnp.zeros((1, d), jnp.float32),
                        out_dtype=jnp.bfloat16)                            # (n_word, D)
        gw = matmul_add(self.adj_word_bf16, xw, self.gcn_b[None, :])       # (n_word, D) f32

        entity_padding_mask = ctx_entities == self.pad_entity_idx
        word_padding_mask = ctx_words == self.pad_word_idx

        # embedding gather is glue (data-dependent indexing)
        entity_representations = ge[ctx_entities]                          # (B, Le, D)
        word_representations = gw[ctx_words]                               # (B, Lw, D)

        ent_mask3 = entity_padding_mask.astype(jnp.float32)[:, :, None]
        word_mask3 = word_padding_mask.astype(jnp.float32)[:, :, None]

        user_rep = attn_gate_forward(
            entity_representations, ent_mask3, word_representations, word_mask3,
            self.attn_e_a, self.attn_e_b_row, self.attn_w_a, self.attn_w_b_row,
            self.gate_w1a_t, self.gate_w1b_t, self.gate_b1[None, :],
            self.gate_w2_t, self.gate_b2[None, :])                         # (B, D)

        # rec scores: user @ ge^T + rec_bias.  ge pre-transposed host-side so
        # the kernel is a canonical (B,D)x(D,n_entity) matmul with a lane-dense
        # n_entity output, streaming ge column tiles from HBM in bf16.
        rec_scores = matmul_add(user_rep.astype(jnp.bfloat16),
                                ge.T.astype(jnp.bfloat16),
                                self.rec_bias[None, :], tn=2048)           # (B, n_entity)

        if mode == "teacher":
            return {
                "rec_scores": rec_scores[:, self.movie_ids],
                "scores": rec_scores,
                "user_rep": user_rep,
                "word_representations": word_representations,
                "word_padding_mask": word_padding_mask,
                "entity_representations": entity_representations,
                "entity_padding_mask": entity_padding_mask,
                "entity_graph_representations": ge,
            }
        # TODO(synk): 'train'/'test'/'pretrain' loss branches (CrossEntropy /
        # infomax MSE) use host-scalar control flow; not ported to Pallas.
        raise NotImplementedError

    def forward(self, batch, mode):
        if mode == "teacher_recommend":
            return self.recommend(batch, "teacher")
        raise NotImplementedError


# ----------------------------------------------------------------------------
# Pure-JAX reference (mirrors PyTorch f32 semantics) for a correctness check
# ----------------------------------------------------------------------------
def reference_forward(model, batch):
    ctx_e = batch["entity_batch"]
    ctx_w = batch["word_batch"]
    W = jnp.einsum("rb,bnd->rnd", model.rgcn_comp, model.rgcn_basis)
    ge = jnp.einsum("rij,rjd->id", model.adj_rel, W) + model.rgcn_root + model.rgcn_bias[None]
    gw = model.adj_word @ (model.word_emb @ model.gcn_w.T) + model.gcn_b[None]

    def self_attn(h, mask_bool, a, b):
        mask = mask_bool.astype(jnp.float32)                       # (B, L)
        e = jnp.matmul(jnp.tanh(jnp.matmul(h, a)), b)              # (B, L, 1)
        full_mask = -1e30 * mask
        batch_mask = (jnp.sum(1.0 - mask, axis=-1, keepdims=True) > 0).astype(jnp.float32)
        e = e + (full_mask * batch_mask)[:, :, None]
        attn = jax.nn.softmax(e, axis=1)
        return jnp.squeeze(jnp.matmul(jnp.swapaxes(attn, 1, 2), h), axis=1)

    ent_mask = ctx_e == model.pad_entity_idx
    word_mask = ctx_w == model.pad_word_idx
    ent_attn = self_attn(ge[ctx_e], ent_mask, model.attn_e_a, model.attn_e_b)
    word_attn = self_attn(gw[ctx_w], word_mask, model.attn_w_a, model.attn_w_b)
    cat = jnp.concatenate([ent_attn, word_attn], axis=-1)
    norm = cat @ model.gate_w1.T + model.gate_b1[None]
    gate = jax.nn.sigmoid(norm @ model.gate_w2.T + model.gate_b2[None])
    user = gate * ent_attn + (1.0 - gate) * word_attn
    scores = user @ ge.T + model.rec_bias[None]
    return scores, user


# ----------------------------------------------------------------------------
# Main
# ----------------------------------------------------------------------------
if __name__ == "__main__":
    n_entity, n_word, n_relation, num_bases = 64, 48, 3, 2
    kg_emb_dim = 32
    batch_size, ent_len, word_len = 2, 8, 10
    pad_entity_idx, pad_word_idx = 0, 0

    # deterministic synthetic knowledge graphs
    entity_edges = []
    for i in range(n_entity):
        entity_edges.append((i, (i + 1) % n_entity, i % n_relation))
        entity_edges.append((i, (i + 5) % n_entity, (i + 1) % n_relation))
    word_edges = ([i for i in range(n_word)] + [(i + 3) % n_word for i in range(n_word)],
                  [(i + 1) % n_word for i in range(n_word)] + [i for i in range(n_word)])
    movie_ids = list(range(8, 24))

    key = jax.random.PRNGKey(0)
    k_model, k_ent, k_word = jax.random.split(key, 3)

    model = KGSFPallas(n_entity=n_entity, n_word=n_word, n_relation=n_relation,
                       num_bases=num_bases, kg_emb_dim=kg_emb_dim,
                       entity_edges=entity_edges, word_edges=word_edges,
                       pad_entity_idx=pad_entity_idx, pad_word_idx=pad_word_idx,
                       movie_ids=movie_ids, key=k_model)

    batch = {
        "entity_batch": jax.random.randint(k_ent, (batch_size, ent_len), 0, n_entity,
                                           dtype=jnp.int32),
        "word_batch": jax.random.randint(k_word, (batch_size, word_len), 0, n_word,
                                         dtype=jnp.int32),
    }

    out = model.forward(batch, "teacher_recommend")
    jax.block_until_ready(out["scores"])
    jax.block_until_ready(out["user_rep"])

    ref_scores, ref_user = reference_forward(model, batch)
    # bf16-streamed operands vs f32 reference -> slightly relaxed tolerances
    np.testing.assert_allclose(np.asarray(out["scores"]), np.asarray(ref_scores),
                               rtol=2e-2, atol=2e-2)
    np.testing.assert_allclose(np.asarray(out["user_rep"]), np.asarray(ref_user),
                               rtol=2e-2, atol=2e-2)

    print("KERNEL_OK")
</pallas_src>

<mosaic_0001>
module attributes {stable_mosaic.version = 11 : i64} {
  func.func @_matmul_add_kernel(%arg0: i32, %arg1: i32, %arg2: i32, %arg3: memref<64x192xbf16, #tpu.memory_space<vmem>>, %arg4: memref<192x32xbf16, #tpu.memory_space<vmem>>, %arg5: memref<64x32xf32, #tpu.memory_space<vmem>>, %arg6: memref<64x32xf32, #tpu.memory_space<vmem>>, %arg7: memref<64x32xf32, #tpu.memory_space<vmem>>) attributes {dimension_semantics = [#tpu.dimension_semantics<parallel>, #tpu.dimension_semantics<parallel>, #tpu.dimension_semantics<arbitrary>], iteration_bounds = array<i64: 1, 1, 1>, scalar_prefetch = 0 : i64, scratch_operands = 1 : i64, tpu.core_type = #tpu.core_type<tc>, window_params = [{transform_indices = @transform_0, window_bounds = array<i64: 64, 192>}, {transform_indices = @transform_1, window_bounds = array<i64: 192, 32>}, {transform_indices = @transform_2, window_bounds = array<i64: 64, 32>}, {transform_indices = @transform_3, window_bounds = array<i64: 64, 32>}]} {
    %c0_i32 = arith.constant 0 : i32
    %0 = arith.cmpi eq, %arg2, %c0_i32 : i32
    %1 = arith.extui %0 : i1 to i32
    %c0_i32_0 = arith.constant 0 : i32
    %2 = arith.cmpi ne, %1, %c0_i32_0 : i32
    scf.if %2 {
      %c0_10 = arith.constant 0 : index
      %c0_11 = arith.constant 0 : index
      %12 = vector.load %arg5[%c0_10, %c0_11] : memref<64x32xf32, #tpu.memory_space<vmem>>, vector<64x32xf32>
      %c0_12 = arith.constant 0 : index
      %c0_13 = arith.constant 0 : index
      %13 = vector.load %arg7[%c0_12, %c0_13] : memref<64x32xf32, #tpu.memory_space<vmem>>, vector<64x32xf32>
      tpu.vector_store %arg7[%c0_12, %c0_13], %12 {strides = array<i32>} : memref<64x32xf32, #tpu.memory_space<vmem>>, vector<64x32xf32>,
    } else {
    }
    %c0 = arith.constant 0 : index
    %c0_1 = arith.constant 0 : index
    %3 = vector.load %arg7[%c0, %c0_1] : memref<64x32xf32, #tpu.memory_space<vmem>>, vector<64x32xf32>
    %c0_2 = arith.constant 0 : index
    %c0_3 = arith.constant 0 : index
    %4 = vector.load %arg3[%c0_2, %c0_3] : memref<64x192xbf16, #tpu.memory_space<vmem>>, vector<64x192xbf16>
    %c0_4 = arith.constant 0 : index
    %c0_5 = arith.constant 0 : index
    %5 = vector.load %arg4[%c0_4, %c0_5] : memref<192x32xbf16, #tpu.memory_space<vmem>>, vector<192x32xbf16>
    %cst = arith.constant dense<0.000000e+00> : vector<64x32xf32>
    %6 = tpu.matmul %4, %5, %cst {dimension_numbers = #tpu.dot_dimension_numbers<[1], [0], [0], [1], [0, 0, 1, 1], [], []>} : vector<64x192xbf16>, vector<192x32xbf16>, vector<64x32xf32> -> vector<64x32xf32>
    %7 = arith.addf %3, %6 : vector<64x32xf32>
    %c0_6 = arith.constant 0 : index
    %c0_7 = arith.constant 0 : index
    %8 = vector.load %arg7[%c0_6, %c0_7] : memref<64x32xf32, #tpu.memory_space<vmem>>, vector<64x32xf32>
    tpu.vector_store %arg7[%c0_6, %c0_7], %7 {strides = array<i32>} : memref<64x32xf32, #tpu.memory_space<vmem>>, vector<64x32xf32>,
    %c0_i32_8 = arith.constant 0 : i32
    %9 = arith.cmpi eq, %arg2, %c0_i32_8 : i32
    %10 = arith.extui %9 : i1 to i32
    %c0_i32_9 = arith.constant 0 : i32
    %11 = arith.cmpi ne, %10, %c0_i32_9 : i32
    scf.if %11 {
      %c0_10 = arith.constant 0 : index
      %c0_11 = arith.constant 0 : index
      %12 = vector.load %arg7[%c0_10, %c0_11] : memref<64x32xf32, #tpu.memory_space<vmem>>, vector<64x32xf32>
      %c0_12 = arith.constant 0 : index
      %c0_13 = arith.constant 0 : index
      %13 = vector.load %arg6[%c0_12, %c0_13] : memref<64x32xf32, #tpu.memory_space<vmem>>, vector<64x32xf32>
      tpu.vector_store %arg6[%c0_12, %c0_13], %12 {strides = array<i32>} : memref<64x32xf32, #tpu.memory_space<vmem>>, vector<64x32xf32>,
    } else {
    }
    return
  }
  func.func @transform_0(%arg0: i32, %arg1: i32, %arg2: i32) -> (i32, i32) {
    %c0_i32 = arith.constant 0 : i32
    return %arg0, %arg2 : i32, i32
  }
  func.func @transform_1(%arg0: i32, %arg1: i32, %arg2: i32) -> (i32, i32) {
    %c0_i32 = arith.constant 0 : i32
    return %arg2, %arg1 : i32, i32
  }
  func.func @transform_2(%arg0: i32, %arg1: i32, %arg2: i32) -> (i32, i32) {
    %c0_i32 = arith.constant 0 : i32
    return %arg0, %arg1 : i32, i32
  }
  func.func @transform_3(%arg0: i32, %arg1: i32, %arg2: i32) -> (i32, i32) {
    %c0_i32 = arith.constant 0 : i32
    return %arg0, %arg1 : i32, i32
  }
}

</mosaic_0001>

<llo_original>
// kernel: tpu_custom_call.1
$region0: #{tpu_custom_call.1}
  #allocation0 [shape = 'u32[]', space=smem, size = 0x4, offset = 0x4, fixed_abs, tag = 'smem constant byte address 0x4 - core index']
  #allocation1 [shape = 'u32[144,128]{1,0:T(1,128)}', space=vmem, size = 0x12000, scoped, tag = 'internal scratch']
  #allocation2 [shape = 'f32[64,32]{1,0:T(8,128)}', space=vmem, size = 0x8000, scoped, tag = 'scratch operand']
  %s0 = inlined_call_operand.vmem [shape: bf16[64,192], index: 0, kind: input, shape index: {}]
  %s1 = inlined_call_operand.vmem [shape: bf16[192,32], index: 1, kind: input, shape index: {}]
  %s2 = inlined_call_operand.vmem [shape: f32[64,32], index: 2, kind: input, shape index: {}]
  %s3 = inlined_call_operand.vmem [shape: f32[64,32], index: 3, kind: output, shape index: {}]
  %s4 = sld [smem:[#allocation0]]
  $region30: #{tpu_custom_call.1} parent=0
    _
  %s6 = ssub.s32 1, %s4
  %s7 = scalar_select 0, %s6, %s4
  // Predicated region
  $region2: #{tpu_custom_call.1} parent=0 // pred_check
    _
  $region3: #{tpu_custom_call.1} parent=0 // pred_check_branch
    %9 = sbr.rel (0) target = $region5
  $region4: #{tpu_custom_call.1} parent=0 // pred_region
    _
  $region5: #{tpu_custom_call.1} parent=0 // pred_fallthru
    _
  // Predicated region
  $region6: #{tpu_custom_call.1} parent=0 // pred_check
    _
  $region7: #{tpu_custom_call.1} parent=0 // pred_check_branch
    %11 = sbr.rel (0) target = $region9
  $region8: #{tpu_custom_call.1} parent=0 // pred_region
    _
  $region9: #{tpu_custom_call.1} parent=0 // pred_fallthru
    _
  // Predicated region
  $region10: #{tpu_custom_call.1} parent=0 // pred_check
    _
  $region11: #{tpu_custom_call.1} parent=0 // pred_check_branch
    %13 = sbr.rel (0) target = $region13
  $region12: #{tpu_custom_call.1} parent=0 // pred_region
    _
  $region13: #{tpu_custom_call.1} parent=0 // pred_fallthru
    _
  %p15 = scmp.eq.s32.totalorder 0, 0
  // Predicated region
  $region14: #{tpu_custom_call.1} parent=0 // pred_check
    %p16 = pneg %p15
  $region15: #{tpu_custom_call.1} parent=0 // pred_check_branch
    %18 = sbr.rel (%p16) target = $region17
  $region16: #{tpu_custom_call.1} parent=0 // pred_region
    %v19 = vld [vmem:[%s2] sm:$0xff]
    %v20 = vld [vmem:[%s2 + $0x8] sm:$0xff]
    %v21 = vld [vmem:[%s2 + $0x10] sm:$0xff]
    %v22 = vld [vmem:[%s2 + $0x18] sm:$0xff]
    %v23 = vld [vmem:[%s2 + $0x20] sm:$0xff]
    %v24 = vld [vmem:[%s2 + $0x28] sm:$0xff]
    %v25 = vld [vmem:[%s2 + $0x30] sm:$0xff]
    %v26 = vld [vmem:[%s2 + $0x38] sm:$0xff]
    %vm27 = vcmask 261120
    %28 = vst.msk [vmem:[#allocation2] sm:$0xff] %vm27, %v19
    %29 = vst.msk [vmem:[#allocation2 + $0x8] sm:$0xff] %vm27, %v20
    %30 = vst.msk [vmem:[#allocation2 + $0x10] sm:$0xff] %vm27, %v21
    %31 = vst.msk [vmem:[#allocation2 + $0x18] sm:$0xff] %vm27, %v22
    %32 = vst.msk [vmem:[#allocation2 + $0x20] sm:$0xff] %vm27, %v23
    %33 = vst.msk [vmem:[#allocation2 + $0x28] sm:$0xff] %vm27, %v24
    %34 = vst.msk [vmem:[#allocation2 + $0x30] sm:$0xff] %vm27, %v25
    %35 = vst.msk [vmem:[#allocation2 + $0x38] sm:$0xff] %vm27, %v26
  $region17: #{tpu_custom_call.1} parent=0 // pred_fallthru
    _
  %v36 = vld [vmem:[#allocation2] sm:$0xff]
  %v37 = vld [vmem:[#allocation2 + $0x8] sm:$0xff]
  %v38 = vld [vmem:[#allocation2 + $0x10] sm:$0xff]
  %v39 = vld [vmem:[#allocation2 + $0x18] sm:$0xff]
  %v40 = vld [vmem:[#allocation2 + $0x20] sm:$0xff]
  %v41 = vld [vmem:[#allocation2 + $0x28] sm:$0xff]
  %v42 = vld [vmem:[#allocation2 + $0x30] sm:$0xff]
  %v43 = vld [vmem:[#allocation2 + $0x38] sm:$0xff]
  %v44 = vld [vmem:[%s0] sm:$0xff]
  %v45 = vld [vmem:[%s0 + $0x8] sm:$0xff]
  %v46 = vld [vmem:[%s0 + $0x10] sm:$0xff]
  %v47 = vld [vmem:[%s0 + $0x18] sm:$0xff]
  %v48 = vld [vmem:[%s0 + $0x20] sm:$0xff]
  %v49 = vld [vmem:[%s0 + $0x28] sm:$0xff]
  %v50 = vld [vmem:[%s0 + $0x30] sm:$0xff]
  %v51 = vld [vmem:[%s0 + $0x38] sm:$0xff]
  %v52 = vld [vmem:[%s1] sm:$0xf]
  %v53 = vld [vmem:[%s1 + $0x4] sm:$0xf]
  %v54 = vld [vmem:[%s1 + $0x8] sm:$0xf]
  %v55 = vld [vmem:[%s1 + $0xc] sm:$0xf]
  %v56 = vld [vmem:[%s1 + $0x10] sm:$0xf]
  %v57 = vld [vmem:[%s1 + $0x14] sm:$0xf]
  %v58 = vld [vmem:[%s1 + $0x18] sm:$0xf]
  %v59 = vld [vmem:[%s1 + $0x1c] sm:$0xf]
  %v60 = vld [vmem:[%s1 + $0x20] sm:$0xf]
  %v61 = vld [vmem:[%s1 + $0x24] sm:$0xf]
  %v62 = vld [vmem:[%s1 + $0x28] sm:$0xf]
  %v63 = vld [vmem:[%s1 + $0x2c] sm:$0xf]
  %v64 = vld [vmem:[%s1 + $0x30] sm:$0xf]
  %v65 = vld [vmem:[%s1 + $0x34] sm:$0xf]
  %v66 = vld [vmem:[%s1 + $0x38] sm:$0xf]
  %v67 = vld [vmem:[%s1 + $0x3c] sm:$0xf]
  %v68 = vld [vmem:[%s1 + $0x40] sm:$0xf]
  %v69 = vld [vmem:[%s1 + $0x44] sm:$0xf]
  %v70 = vld [vmem:[%s1 + $0x48] sm:$0xf]
  %v71 = vld [vmem:[%s1 + $0x4c] sm:$0xf]
  %v72 = vld [vmem:[%s1 + $0x50] sm:$0xf]
  %v73 = vld [vmem:[%s1 + $0x54] sm:$0xf]
  %v74 = vld [vmem:[%s1 + $0x58] sm:$0xf]
  %v75 = vld [vmem:[%s1 + $0x5c] sm:$0xf]
  %v84 = vunpack.c.l.b16 %v44
  %v85 = vunpack.c.h.b16 %v44
  %v86 = vunpack.c.l.b16 %v45
  %v87 = vunpack.c.h.b16 %v45
  %v88 = vunpack.c.l.b16 %v46
  %v89 = vunpack.c.h.b16 %v46
  %v90 = vunpack.c.l.b16 %v47
  %v91 = vunpack.c.h.b16 %v47
  %v92 = vunpack.c.l.b16 %v48
  %v93 = vunpack.c.h.b16 %v48
  %v94 = vunpack.c.l.b16 %v49
  %v95 = vunpack.c.h.b16 %v49
  %v96 = vunpack.c.l.b16 %v50
  %v97 = vunpack.c.h.b16 %v50
  %v98 = vunpack.c.l.b16 %v51
  %v99 = vunpack.c.h.b16 %v51
  %v100 = vpack.c.b16 %v86, %v84
  %v101 = vpack.c.b16 %v87, %v85
  %v102 = vpack.c.b16 %v90, %v88
  %v103 = vpack.c.b16 %v91, %v89
  %v104 = vpack.c.b16 %v94, %v92
  %v105 = vpack.c.b16 %v95, %v93
  %v106 = vpack.c.b16 %v98, %v96
  %v107 = vpack.c.b16 %v99, %v97
  %v136 = vunpack.c.l.b16 %v52
  %v137 = vunpack.c.l.b16 %v53
  %v138 = vunpack.c.l.b16 %v54
  %v139 = vunpack.c.l.b16 %v55
  %v140 = vunpack.c.l.b16 %v56
  %v141 = vunpack.c.l.b16 %v57
  %v142 = vunpack.c.l.b16 %v58
  %v143 = vunpack.c.l.b16 %v59
  %v144 = vunpack.c.l.b16 %v60
  %v145 = vunpack.c.l.b16 %v61
  %v146 = vunpack.c.l.b16 %v62
  %v147 = vunpack.c.l.b16 %v63
  %v148 = vunpack.c.l.b16 %v64
  %v149 = vunpack.c.l.b16 %v65
  %v150 = vunpack.c.l.b16 %v66
  %v151 = vunpack.c.l.b16 %v67
  %v152 = vunpack.c.l.b16 %v68
  %v153 = vunpack.c.l.b16 %v69
  %v154 = vunpack.c.l.b16 %v70
  %v155 = vunpack.c.l.b16 %v71
  %v156 = vunpack.c.l.b16 %v72
  %v157 = vunpack.c.l.b16 %v73
  %v158 = vunpack.c.l.b16 %v74
  %v159 = vunpack.c.l.b16 %v75
  %v160 = vpack.c.b16 %v137, %v136
  %v161 = vpack.c.b16 %v139, %v138
  %v162 = vpack.c.b16 %v141, %v140
  %v163 = vpack.c.b16 %v143, %v142
  %v164 = vpack.c.b16 %v145, %v144
  %v165 = vpack.c.b16 %v147, %v146
  %v166 = vpack.c.b16 %v149, %v148
  %v167 = vpack.c.b16 %v151, %v150
  %v168 = vpack.c.b16 %v153, %v152
  %v169 = vpack.c.b16 %v155, %v154
  %v170 = vpack.c.b16 %v157, %v156
  %v171 = vpack.c.b16 %v159, %v158
  %vm184 = vcmask 523264
  %v186 = vsel %vm184, %v101, 0
  %v189 = vsel %vm184, %v103, 0
  %v192 = vsel %vm184, %v105, 0
  %v195 = vsel %vm184, %v107, 0
  %197 = vmatprep.subr.bf16.mxu0 0
  %198 = vmatpush1.bf16.msra.mxu0 %v160
  %199 = vmatprep.subr.bf16.mxu0 0
  %200 = vmatpush1.bf16.msra.mxu0 %v161
  %201 = vmatprep.subr.bf16.mxu0 0
  %202 = vmatpush1.bf16.msra.mxu0 %v162
  %203 = vmatprep.subr.bf16.mxu0 0
  %204 = vmatpush1.bf16.msra.mxu0 %v163
  %205 = vmatprep.subr.bf16.mxu0 0
  %206 = vmatpush1.bf16.msra.mxu0 %v164
  %207 = vmatprep.subr.bf16.mxu0 0
  %208 = vmatpush1.bf16.msra.mxu0 %v165
  %209 = vmatprep.subr.bf16.mxu0 0
  %210 = vmatpush1.bf16.msra.mxu0 %v166
  %211 = vmatprep.subr.bf16.mxu0 0
  %212 = vmatpush1.bf16.msra.mxu0 %v167
  %213 = vmatprep.subr.bf16.mxu0 0
  %214 = vmatpush1.bf16.msra.mxu0 %v168
  %215 = vmatprep.subr.bf16.mxu0 0
  %216 = vmatpush1.bf16.msra.mxu0 %v169
  %217 = vmatprep.subr.bf16.mxu0 0
  %218 = vmatpush1.bf16.msra.mxu0 %v170
  %219 = vmatprep.subr.bf16.mxu0 0
  %220 = vmatpush1.bf16.msra.mxu0 %v171
  %221 = vmatprep.subr.bf16.mxu0 0
  %222 = vmatpush1.bf16.msra.mxu0 0
  %223 = vmatprep.subr.bf16.mxu0 0
  %224 = vmatpush1.bf16.msra.mxu0 0
  %225 = vmatprep.subr.bf16.mxu0 0
  %226 = vmatpush1.bf16.msra.mxu0 0
  %227 = vmatprep.subr.bf16.mxu0 0
  %228 = vmatpush1.bf16.msra.mxu0 0
  %229 = vmatprep.mubr.bf16.mxu0 %v186
  %230 = vmatmul.mubr.bf16.gmra.mrb[0].mxu0 %v100
  %v231 = vpop.f32.mrb[0].mxu0
  %v232 = vadd.f32 0.0, %v231
  %v233 = vpop.f32.mrb[0].mxu0
  %v234 = vpop.f32.mrb[0].mxu0
  %v235 = vadd.f32 0.0, %v234
  %v236 = vpop.f32.mrb[0].mxu0
  %237 = vmatprep.mubr.bf16.mxu0 %v189
  %238 = vmatmul.mubr.bf16.gmra.mrb[0].mxu0 %v102
  %v239 = vpop.f32.mrb[0].mxu0
  %v240 = vadd.f32 0.0, %v239
  %v241 = vpop.f32.mrb[0].mxu0
  %v242 = vpop.f32.mrb[0].mxu0
  %v243 = vadd.f32 0.0, %v242
  %v244 = vpop.f32.mrb[0].mxu0
  %245 = vmatprep.mubr.bf16.mxu0 %v192
  %246 = vmatmul.mubr.bf16.gmra.mrb[0].mxu0 %v104
  %v247 = vpop.f32.mrb[0].mxu0
  %v248 = vadd.f32 0.0, %v247
  %v249 = vpop.f32.mrb[0].mxu0
  %v250 = vpop.f32.mrb[0].mxu0
  %v251 = vadd.f32 0.0, %v250
  %v252 = vpop.f32.mrb[0].mxu0
  %253 = vmatprep.mubr.bf16.mxu0 %v195
  %254 = vmatmul.mubr.bf16.gmra.mrb[0].mxu0 %v106
  %v255 = vpop.f32.mrb[0].mxu0
  %v256 = vadd.f32 0.0, %v255
  %v257 = vpop.f32.mrb[0].mxu0
  %v258 = vpop.f32.mrb[0].mxu0
  %v259 = vadd.f32 0.0, %v258
  %v260 = vpop.f32.mrb[0].mxu0
  %261 = vdwg.mxu0
  %v262 = vadd.f32 %v36, %v232
  %v263 = vadd.f32 %v37, %v235
  %v264 = vadd.f32 %v38, %v240
  %v265 = vadd.f32 %v39, %v243
  %v266 = vadd.f32 %v40, %v248
  %v267 = vadd.f32 %v41, %v251
  %v268 = vadd.f32 %v42, %v256
  %v269 = vadd.f32 %v43, %v259
  %vm270 = vcmask 261120
  %271 = vst.msk [vmem:[#allocation2] sm:$0xff] %vm270, %v262
  %272 = vst.msk [vmem:[#allocation2 + $0x8] sm:$0xff] %vm270, %v263
  %273 = vst.msk [vmem:[#allocation2 + $0x10] sm:$0xff] %vm270, %v264
  %274 = vst.msk [vmem:[#allocation2 + $0x18] sm:$0xff] %vm270, %v265
  %275 = vst.msk [vmem:[#allocation2 + $0x20] sm:$0xff] %vm270, %v266
  %276 = vst.msk [vmem:[#allocation2 + $0x28] sm:$0xff] %vm270, %v267
  %277 = vst.msk [vmem:[#allocation2 + $0x30] sm:$0xff] %vm270, %v268
  %278 = vst.msk [vmem:[#allocation2 + $0x38] sm:$0xff] %vm270, %v269
  // Predicated region
  $region18: #{tpu_custom_call.1} parent=0 // pred_check
    %p279 = pneg %p15
  $region19: #{tpu_custom_call.1} parent=0 // pred_check_branch
    %281 = sbr.rel (%p279) target = $region21
  $region20: #{tpu_custom_call.1} parent=0 // pred_region
    %v282 = vld [vmem:[#allocation2] sm:$0xff]
    %v283 = vld [vmem:[#allocation2 + $0x8] sm:$0xff]
    %v284 = vld [vmem:[#allocation2 + $0x10] sm:$0xff]
    %v285 = vld [vmem:[#allocation2 + $0x18] sm:$0xff]
    %v286 = vld [vmem:[#allocation2 + $0x20] sm:$0xff]
    %v287 = vld [vmem:[#allocation2 + $0x28] sm:$0xff]
    %v288 = vld [vmem:[#allocation2 + $0x30] sm:$0xff]
    %v289 = vld [vmem:[#allocation2 + $0x38] sm:$0xff]
    %290 = vst.msk [vmem:[%s3] sm:$0xff] %vm270, %v282
    %291 = vst.msk [vmem:[%s3 + $0x8] sm:$0xff] %vm270, %v283
    %292 = vst.msk [vmem:[%s3 + $0x10] sm:$0xff] %vm270, %v284
    %293 = vst.msk [vmem:[%s3 + $0x18] sm:$0xff] %vm270, %v285
    %294 = vst.msk [vmem:[%s3 + $0x20] sm:$0xff] %vm270, %v286
    %295 = vst.msk [vmem:[%s3 + $0x28] sm:$0xff] %vm270, %v287
    %296 = vst.msk [vmem:[%s3 + $0x30] sm:$0xff] %vm270, %v288
    %297 = vst.msk [vmem:[%s3 + $0x38] sm:$0xff] %vm270, %v289
  $region21: #{tpu_custom_call.1} parent=0 // pred_fallthru
    _
  // Predicated region
  $region22: #{tpu_custom_call.1} parent=0 // pred_check
    _
  $region23: #{tpu_custom_call.1} parent=0 // pred_check_branch
    %299 = sbr.rel (0) target = $region25
  $region24: #{tpu_custom_call.1} parent=0 // pred_region
    _
  $region25: #{tpu_custom_call.1} parent=0 // pred_fallthru
    _
  // Predicated region
  $region26: #{tpu_custom_call.1} parent=0 // pred_check
    _
  $region27: #{tpu_custom_call.1} parent=0 // pred_check_branch
    %301 = sbr.rel (0) target = $region29
  $region28: #{tpu_custom_call.1} parent=0 // pred_region
    _
  $region29: #{tpu_custom_call.1} parent=0 // pred_fallthru
    _

</llo_original>
